<compile_context>
chip_gen: v5e
topology: v5e:2x2
jax: 0.10.0
libtpu: 0.0.40
codegen_flags: <defaults>
</compile_context>

<pallas_src>
import jax
import jax.numpy as jnp
from jax import lax
from jax.experimental import pallas as pl
from jax.experimental.pallas import tpu as pltpu


def _round_up(x, m):
    return ((x + m - 1) // m) * m


def _logreg_kernel(x_ref, w_ref, b_ref, o_ref):
    # x_ref: (TILE_B, D), w_ref: (C_pad, D), b_ref: (1, C_pad), o_ref: (TILE_B, C_pad)
    # Contract on D directly against the (C, D)-layout weight (no wrapper transpose).
    logits = lax.dot_general(
        x_ref[...],
        w_ref[...],
        dimension_numbers=(((1,), (1,)), ((), ())),
        preferred_element_type=jnp.float32,
    )
    logits = logits + b_ref[...]          # broadcast (1, C_pad) over the batch tile
    o_ref[...] = jax.nn.sigmoid(logits).astype(o_ref.dtype)


def logistic_regression(x, weight, bias, *, tile_b=512):
    """Forward pass matching torch: sigmoid(x @ weight.T + bias).

    x:      (B, D) float32
    weight: (C, D) float32   (PyTorch nn.Linear layout, passed through untransposed)
    bias:   (C,)   float32
    returns (B, C) float32
    """
    B, D = x.shape
    C = weight.shape[0]

    # Lane-dense output: pad the class dim to a multiple of 128 lanes.
    C_pad = _round_up(max(C, 1), 128)
    # Batch tile: multiple of 8 sublanes (fp32), capped at tile_b rows.
    TILE_B = min(tile_b, _round_up(B, 8))
    B_pad = _round_up(B, TILE_B)

    x_p = x if B_pad == B else jnp.pad(x, ((0, B_pad - B), (0, 0)))
    w_p = weight if C_pad == C else jnp.pad(weight, ((0, C_pad - C), (0, 0)))
    b_p = (bias if C_pad == C else jnp.pad(bias, (0, C_pad - C))).reshape(1, C_pad)

    grid = (B_pad // TILE_B,)

    itemsize = 4  # fp32
    # Double-buffered x/out tiles + resident (padded) weight & bias, plus headroom.
    est_vmem = itemsize * (2 * TILE_B * (D + C_pad) + 2 * C_pad * (D + 1)) + (2 << 20)
    vmem_limit = int(min(max(est_vmem, 32 << 20), 60 << 20))

    cost = pl.CostEstimate(
        flops=2 * B_pad * D * C_pad,
        transcendentals=B_pad * C_pad,  # one exp per output element (sigmoid)
        bytes_accessed=itemsize * (B_pad * D + C_pad * D + C_pad + B_pad * C_pad),
    )

    # TODO(synk): for very wide D (weight tile >> VMEM budget) add a trailing
    # K-reduction grid axis with a pl.when-gated f32 accumulator; unnecessary here.
    out = pl.pallas_call(
        _logreg_kernel,
        out_shape=jax.ShapeDtypeStruct((B_pad, C_pad), jnp.float32),
        grid_spec=pltpu.PrefetchScalarGridSpec(
            num_scalar_prefetch=0,
            grid=grid,
            in_specs=[
                pl.BlockSpec((TILE_B, D), lambda i: (i, 0)),   # batch-tiled activations
                pl.BlockSpec((C_pad, D), lambda i: (0, 0)),    # VMEM-resident weight
                pl.BlockSpec((1, C_pad), lambda i: (0, 0)),    # VMEM-resident bias
            ],
            out_specs=pl.BlockSpec((TILE_B, C_pad), lambda i: (i, 0)),
        ),
        compiler_params=pltpu.CompilerParams(
            dimension_semantics=("parallel",),   # shards batch across v7x's 2 TCs
            vmem_limit_bytes=vmem_limit,
        ),
        cost_estimate=cost,
    )(x_p, w_p, b_p)

    # Slice padded batch rows / padded class lanes back to the logical shape.
    return out[:B, :C]


if __name__ == "__main__":
    # Small shapes consistent with the module: batch=8, input_size=32, num_classes=8
    B, D, C = 8, 32, 8
    key = jax.random.PRNGKey(0)
    kx, kw, kb = jax.random.split(key, 3)

    x = jax.random.normal(kx, (B, D), dtype=jnp.float32)
    # Deterministic parameter init (mimics nn.Linear's uniform(-1/sqrt(D), 1/sqrt(D)))
    bound = 1.0 / jnp.sqrt(jnp.float32(D))
    weight = jax.random.uniform(kw, (C, D), minval=-bound, maxval=bound, dtype=jnp.float32)
    bias = jax.random.uniform(kb, (C,), minval=-bound, maxval=bound, dtype=jnp.float32)

    out = logistic_regression(x, weight, bias)
    out = jax.block_until_ready(out)

    # Reference check in plain JAX
    ref = jax.nn.sigmoid(x @ weight.T + bias)
    assert out.shape == (B, C)
    assert jnp.allclose(out, ref, atol=1e-5, rtol=1e-5)

    print("KERNEL_OK")
</pallas_src>

<mosaic_0001>
module attributes {stable_mosaic.version = 11 : i64} {
  func.func @_logreg_kernel(%arg0: i32, %arg1: memref<8x32xf32, #tpu.memory_space<vmem>>, %arg2: memref<128x32xf32, #tpu.memory_space<vmem>>, %arg3: memref<1x128xf32, #tpu.memory_space<vmem>>, %arg4: memref<8x128xf32, #tpu.memory_space<vmem>>) attributes {dimension_semantics = [#tpu.dimension_semantics<parallel>], iteration_bounds = array<i64: 1>, scalar_prefetch = 0 : i64, scratch_operands = 0 : i64, tpu.core_type = #tpu.core_type<tc>, window_params = [{transform_indices = @transform_0, window_bounds = array<i64: 8, 32>}, {pipeline_mode = #tpu.pipeline_mode<synchronous>, transform_indices = @transform_1, window_bounds = array<i64: 128, 32>}, {pipeline_mode = #tpu.pipeline_mode<synchronous>, transform_indices = @transform_2, window_bounds = array<i64: 1, 128>}, {transform_indices = @transform_3, window_bounds = array<i64: 8, 128>}]} {
    %c0 = arith.constant 0 : index
    %c0_0 = arith.constant 0 : index
    %0 = vector.load %arg1[%c0, %c0_0] : memref<8x32xf32, #tpu.memory_space<vmem>>, vector<8x32xf32>
    %c0_1 = arith.constant 0 : index
    %c0_2 = arith.constant 0 : index
    %1 = vector.load %arg2[%c0_1, %c0_2] : memref<128x32xf32, #tpu.memory_space<vmem>>, vector<128x32xf32>
    %cst = arith.constant dense<0.000000e+00> : vector<8x128xf32>
    %2 = tpu.matmul %0, %1, %cst {dimension_numbers = #tpu.dot_dimension_numbers<[1], [1], [0], [0], [0, 0, 1, 0], [], []>} : vector<8x32xf32>, vector<128x32xf32>, vector<8x128xf32> -> vector<8x128xf32>
    %c0_3 = arith.constant 0 : index
    %c0_4 = arith.constant 0 : index
    %3 = vector.load %arg3[%c0_3, %c0_4] : memref<1x128xf32, #tpu.memory_space<vmem>>, vector<1x128xf32>
    %4 = vector.broadcast %3 : vector<1x128xf32> to vector<8x128xf32>
    %5 = arith.addf %2, %4 : vector<8x128xf32>
    %6 = arith.negf %5 : vector<8x128xf32>
    %7 = math.exp %6 : vector<8x128xf32>
    %cst_5 = arith.constant 1.000000e+00 : f32
    %8 = vector.broadcast %cst_5 : f32 to vector<8x128xf32>
    %9 = arith.addf %8, %7 : vector<8x128xf32>
    %10 = arith.divf %8, %9 : vector<8x128xf32>
    %c0_6 = arith.constant 0 : index
    %c0_7 = arith.constant 0 : index
    %11 = vector.load %arg4[%c0_6, %c0_7] : memref<8x128xf32, #tpu.memory_space<vmem>>, vector<8x128xf32>
    tpu.vector_store %arg4[%c0_6, %c0_7], %10 {strides = array<i32>} : memref<8x128xf32, #tpu.memory_space<vmem>>, vector<8x128xf32>,
    return
  }
  func.func @transform_0(%arg0: i32) -> (i32, i32) {
    %c0_i32 = arith.constant 0 : i32
    %c0_i32_0 = arith.constant 0 : i32
    return %arg0, %c0_i32 : i32, i32
  }
  func.func @transform_1(%arg0: i32) -> (i32, i32) {
    %c0_i32 = arith.constant 0 : i32
    %c0_i32_0 = arith.constant 0 : i32
    %c0_i32_1 = arith.constant 0 : i32
    return %c0_i32, %c0_i32_0 : i32, i32
  }
  func.func @transform_2(%arg0: i32) -> (i32, i32) {
    %c0_i32 = arith.constant 0 : i32
    %c0_i32_0 = arith.constant 0 : i32
    %c0_i32_1 = arith.constant 0 : i32
    return %c0_i32, %c0_i32_0 : i32, i32
  }
  func.func @transform_3(%arg0: i32) -> (i32, i32) {
    %c0_i32 = arith.constant 0 : i32
    %c0_i32_0 = arith.constant 0 : i32
    return %arg0, %c0_i32 : i32, i32
  }
}

</mosaic_0001>

<llo_original>
// kernel: tpu_custom_call.1
$region0: #{tpu_custom_call.1}
  #allocation0 [shape = 'u32[]', space=smem, size = 0x4, offset = 0x4, fixed_abs, tag = 'smem constant byte address 0x4 - core index']
  #allocation1 [shape = 'u32[72,128]{1,0:T(1,128)}', space=vmem, size = 0x9000, scoped, tag = 'internal scratch']
  %s0 = inlined_call_operand.vmem [shape: f32[8,32], index: 0, kind: input, shape index: {}]
  %s1 = inlined_call_operand.vmem [shape: f32[128,32], index: 1, kind: input, shape index: {}]
  %s2 = inlined_call_operand.vmem [shape: f32[1,128], index: 2, kind: input, shape index: {}]
  %s3 = inlined_call_operand.hbm [shape: f32[8,128], index: 3, kind: output, shape index: {}]
  %s4 = sld [smem:[#allocation0]]
  $region22: #{tpu_custom_call.1} parent=0
    _
  %s6 = ssub.s32 1, %s4
  %s7 = scalar_select 0, %s6, %s4
  $region1: #{tpu_custom_call.1} parent=0
    #allocation2 [shape = 'u8[4096]{0}', space=vmem, size = 0x1000, scoped, tag = 'output window, operand 0, single buffered']
    #allocation3 [shape = 's32[1]{0}', space=sflag, size = 0x4, scoped, tag = 'scoped memory for tpu_custom_call.1']
    %8 = vsyncpa [#allocation3], 0
    // Predicated region
    $region2: #{tpu_custom_call.1} parent=1 // pred_check
      _
    $region3: #{tpu_custom_call.1} parent=1 // pred_check_branch
      %10 = sbr.rel (0) target = $region5
    $region4: #{tpu_custom_call.1} parent=1 // pred_region
      _
    $region5: #{tpu_custom_call.1} parent=1 // pred_fallthru
      _
    // Predicated region
    $region6: #{tpu_custom_call.1} parent=1 // pred_check
      _
    $region7: #{tpu_custom_call.1} parent=1 // pred_check_branch
      %12 = sbr.rel (0) target = $region9
    $region8: #{tpu_custom_call.1} parent=1 // pred_region
      _
    $region9: #{tpu_custom_call.1} parent=1 // pred_fallthru
      _
    // Predicated region
    $region10: #{tpu_custom_call.1} parent=1 // pred_check
      _
    $region11: #{tpu_custom_call.1} parent=1 // pred_check_branch
      %14 = sbr.rel (0) target = $region13
    $region12: #{tpu_custom_call.1} parent=1 // pred_region
      _
    $region13: #{tpu_custom_call.1} parent=1 // pred_fallthru
      _
    %v15 = vld [vmem:[%s0] sm:$0xff]
    %v16 = vld [vmem:[%s1] sm:$0xff]
    %v17 = vld [vmem:[%s1 + $0x8] sm:$0xff]
    %v18 = vld [vmem:[%s1 + $0x10] sm:$0xff]
    %v19 = vld [vmem:[%s1 + $0x18] sm:$0xff]
    %v20 = vld [vmem:[%s1 + $0x20] sm:$0xff]
    %v21 = vld [vmem:[%s1 + $0x28] sm:$0xff]
    %v22 = vld [vmem:[%s1 + $0x30] sm:$0xff]
    %v23 = vld [vmem:[%s1 + $0x38] sm:$0xff]
    %v24 = vld [vmem:[%s1 + $0x40] sm:$0xff]
    %v25 = vld [vmem:[%s1 + $0x48] sm:$0xff]
    %v26 = vld [vmem:[%s1 + $0x50] sm:$0xff]
    %v27 = vld [vmem:[%s1 + $0x58] sm:$0xff]
    %v28 = vld [vmem:[%s1 + $0x60] sm:$0xff]
    %v29 = vld [vmem:[%s1 + $0x68] sm:$0xff]
    %v30 = vld [vmem:[%s1 + $0x70] sm:$0xff]
    %v31 = vld [vmem:[%s1 + $0x78] sm:$0xff]
    %v32 = vld [vmem:[%s2] sm:$0x1]
    %v34 = vperm.slane %v32, 0
    %vm36 = vcmask 261120
    %v38 = vsel %vm36, %v15, 0
    %v41 = vsel %vm36, %v16, 0
    %v44 = vsel %vm36, %v17, 0
    %v47 = vsel %vm36, %v18, 0
    %v50 = vsel %vm36, %v19, 0
    %v53 = vsel %vm36, %v20, 0
    %v56 = vsel %vm36, %v21, 0
    %v59 = vsel %vm36, %v22, 0
    %v62 = vsel %vm36, %v23, 0
    %v65 = vsel %vm36, %v24, 0
    %v68 = vsel %vm36, %v25, 0
    %v71 = vsel %vm36, %v26, 0
    %v74 = vsel %vm36, %v27, 0
    %v77 = vsel %vm36, %v28, 0
    %v80 = vsel %vm36, %v29, 0
    %v83 = vsel %vm36, %v30, 0
    %v86 = vsel %vm36, %v31, 0
    %88 = vmatpush.xpose.msra.mxu0 %v86
    %89 = vmatpush.xpose.msra.mxu0 %v83
    %90 = vmatpush.xpose.msra.mxu0 %v80
    %91 = vmatpush.xpose.msra.mxu0 %v77
    %92 = vmatpush.xpose.msra.mxu0 %v74
    %93 = vmatpush.xpose.msra.mxu0 %v71
    %94 = vmatpush.xpose.msra.mxu0 %v68
    %95 = vmatpush.xpose.msra.mxu0 %v65
    %96 = vmatpush.xpose.msra.mxu0 %v62
    %97 = vmatpush.xpose.msra.mxu0 %v59
    %98 = vmatpush.xpose.msra.mxu0 %v56
    %99 = vmatpush.xpose.msra.mxu0 %v53
    %100 = vmatpush.xpose.msra.mxu0 %v50
    %101 = vmatpush.xpose.msra.mxu0 %v47
    %102 = vmatpush.xpose.msra.mxu0 %v44
    %103 = vmatpush.xpose.msra.mxu0 %v41
    %104 = vmatmul.f32.gmra.mxu0 %v38
    %v105 = vpop.f32.mrf.mxu0
    %v106 = vadd.f32 %v34, %v105
    %107 = vdwg.mxu0
    %v108 = vxor.u32 %v106, 2147483648
    %v109 = vmul.f32 %v108, 1.442695
    %v110 = vpow.pop %v109
    %v111 = vadd.f32 %v110, 1.0
    %v112 = vrcp.pop %v111
    %v113 = vmul.f32 %v111, %v112
    %v114 = vsub.f32 1.0, %v113
    %v115 = vmul.f32 %v112, %v114
    %v116 = vadd.f32 %v112, %v115
    %vm117 = vweird.f32 %v111
    %vm118 = vweird.f32 %v112
    %vm119 = vmor %vm117, %vm118
    %v120 = vsel %vm119, %v112, %v116
    %v121 = vand.u32 2147483647, %v111
    %vm122 = vcmp.eq.f32.partialorder %v121, 8.507059e+37
    %v123 = vand.u32 %v111, 2147483648
    %v124 = vor.u32 1.1754944e-38, %v123
    %v125 = vsel %vm122, %v124, %v120
    %v126 = vmul.f32 1.0, %v125
    %127 = vst [vmem:[#allocation2] sm:$0xff] %v126
    // Predicated region
    $region14: #{tpu_custom_call.1} parent=1 // pred_check
      _
    $region15: #{tpu_custom_call.1} parent=1 // pred_check_branch
      %129 = sbr.rel (0) target = $region17
    $region16: #{tpu_custom_call.1} parent=1 // pred_region
      %131 = vsyncadd [#allocation3], 0
      %s133 = sshll.u32 [#allocation2], 4
      %s134 = int_to_ptr.vmem [resolvable:$true] %s133
      %s135 = sshll.u32 %s3, 4
      %s136 = int_to_ptr.hbm [resolvable:$true] %s135
      %138 = dma.vmem_to_hbm [thread:$0]  %s134, 128, %s136, [#allocation3]
    $region17: #{tpu_custom_call.1} parent=1 // pred_fallthru
      _
    // Predicated region
    $region18: #{tpu_custom_call.1} parent=1 // pred_check
      _
    $region19: #{tpu_custom_call.1} parent=1 // pred_check_branch
      %140 = sbr.rel (0) target = $region21
    $region20: #{tpu_custom_call.1} parent=1 // pred_region
      %142 = dma.done [#allocation3], 128
    $region21: #{tpu_custom_call.1} parent=1 // pred_fallthru
      _
    %143 = vsyncpa [#allocation3], 1

</llo_original>
